<compile_context>
chip_gen: v5e
topology: v5e:2x2
jax: 0.10.0
libtpu: 0.0.40
codegen_flags: <defaults>
</compile_context>

<pallas_src>
import functools

import jax
import jax.numpy as jnp
from jax.experimental import pallas as pl
from jax.experimental.pallas import tpu as pltpu


def fsmn_kernel(x_ref, w_ref, b_ref, o_ref, z_ref, *, stride):
    """One grid step processes a (tB, S, D) slab of batches.

    x_ref : (tB, S, D)         input slab
    w_ref : (2D, H)            fused weight [Wl; Wm]
    b_ref : (1, H)             fused bias  (bl + bm)
    o_ref : (tB, S, H)         output slab
    z_ref : (S, 2D) f32 VMEM   scratch holding [x | windowed_mean(x)] per batch
    """
    tB, S, D = x_ref.shape

    # Grid-step-invariant pieces hoisted out of the per-batch loop.
    w = w_ref[...]                                            # (2D, H)
    b = b_ref[...].astype(jnp.float32)                        # (1, H)
    seq = jax.lax.broadcasted_iota(jnp.int32, (S, D), 0)      # row (time) index
    inv_len = 1.0 / (jnp.minimum(seq, stride).astype(jnp.float32) + 1.0)

    n_shift = min(stride, S - 1)

    for bb in range(tB):                       # static unroll over fused batches
        x = x_ref[bb].astype(jnp.float32)      # (S, D)

        # Causal windowed SUM over the sequence: `stride` shifted adds.
        z_ref[:, D:] = x
        for k in range(1, n_shift + 1):
            z_ref[k:, D:] = z_ref[k:, D:] + x[: S - k, :]
        # sum -> mean (precomputed per-row reciprocal of the window length)
        z_ref[:, D:] = z_ref[:, D:] * inv_len
        # first half of z is x itself
        z_ref[:, :D] = x

        # Single fused MXU matmul: [x | mean(x)] @ [Wl; Wm]  (f32 accumulation)
        acc = jnp.dot(z_ref[...].astype(w.dtype), w,
                      preferred_element_type=jnp.float32)
        o_ref[bb] = (acc + b).astype(o_ref.dtype)


def _pick_batch_tile(B, S, D, H, itemsize,
                     budget_bytes=8 * 1024 * 1024, max_tile=8):
    """Largest divisor of B (<= max_tile) whose double-buffered x/out slabs fit VMEM budget."""
    per_batch = 2 * S * (D + H) * itemsize          # in + out, double-buffered
    tb = max(1, min(B, max_tile, budget_bytes // max(per_batch, 1)))
    while B % tb:
        tb -= 1
    return tb


def fsmn_forward(x, wl, bl, wm, bm, *, stride, batch_tile=None):
    """x: (B, S, D); wl/wm: (D, H) (pre-transposed); bl/bm: (1, H)  ->  (B, S, H)."""
    B, S, D = x.shape
    H = wl.shape[1]

    # Fuse the two projections: [x | mean(x)] @ [Wl; Wm] + (bl + bm).
    # (mean is linear and bm is row-constant, so pre-adding the biases is exact.)
    w = jnp.concatenate([wl, wm], axis=0)            # (2D, H)
    b = (bl + bm).astype(jnp.float32)                # (1, H)

    tb = batch_tile or _pick_batch_tile(B, S, D, H, x.dtype.itemsize)
    kernel = functools.partial(fsmn_kernel, stride=stride)

    return pl.pallas_call(
        kernel,
        out_shape=jax.ShapeDtypeStruct((B, S, H), x.dtype),
        grid=(B // tb,),
        in_specs=[
            pl.BlockSpec((tb, S, D), lambda i: (i, 0, 0)),   # per-step batch slab
            pl.BlockSpec((2 * D, H), lambda i: (0, 0)),      # fused weight (VMEM resident)
            pl.BlockSpec((1, H), lambda i: (0, 0)),          # fused bias   (VMEM resident)
        ],
        out_specs=pl.BlockSpec((tb, S, H), lambda i: (i, 0, 0)),
        scratch_shapes=[pltpu.VMEM((S, 2 * D), jnp.float32)],
        compiler_params=pltpu.CompilerParams(
            dimension_semantics=("parallel",),
            vmem_limit_bytes=32 * 1024 * 1024,
        ),
    )(x, w, b)


def fsmn_reference(x, wl, bl, wm, bm, *, stride):
    """Plain-JAX reference mirroring the PyTorch loop."""
    B, S, D = x.shape
    h = x @ wl + bl
    mems = []
    for i in range(S):
        start = max(0, i - stride)
        xm = x[:, start:i + 1].mean(axis=1)        # (B, D)
        mems.append(xm @ wm + bm[0])               # (B, H)
    mem = jnp.stack(mems, axis=1)                  # (B, S, H)
    return h + mem


if __name__ == "__main__":
    # Small shapes consistent with the module: batch=2, seq=8, input_dim=32, hidden_dim=32
    B, S, D, H = 2, 8, 32, 32
    stride = 1

    key = jax.random.PRNGKey(0)
    kx, kwl, kbl, kwm, kbm = jax.random.split(key, 5)

    # Deterministic parameter init, PyTorch-Linear-style uniform(-1/sqrt(D), 1/sqrt(D)).
    bound = 1.0 / jnp.sqrt(jnp.float32(D))
    x = jax.random.normal(kx, (B, S, D), dtype=jnp.float32)
    wl = jax.random.uniform(kwl, (D, H), jnp.float32, -bound, bound)   # linear.weight.T
    bl = jax.random.uniform(kbl, (1, H), jnp.float32, -bound, bound)   # linear.bias
    wm = jax.random.uniform(kwm, (D, H), jnp.float32, -bound, bound)   # memory.weight.T
    bm = jax.random.uniform(kbm, (1, H), jnp.float32, -bound, bound)   # memory.bias

    out = fsmn_forward(x, wl, bl, wm, bm, stride=stride)
    out = jax.block_until_ready(out)

    ref = fsmn_reference(x, wl, bl, wm, bm, stride=stride)
    assert out.shape == (B, S, H)
    assert jnp.allclose(out, ref, atol=2e-5, rtol=2e-5), "Pallas output mismatch vs reference"

    print("KERNEL_OK")
</pallas_src>

<mosaic_0001>
module attributes {stable_mosaic.version = 11 : i64} {
  func.func @fsmn_kernel(%arg0: i32, %arg1: memref<2x8x32xf32, #tpu.memory_space<vmem>>, %arg2: memref<64x32xf32, #tpu.memory_space<vmem>>, %arg3: memref<1x32xf32, #tpu.memory_space<vmem>>, %arg4: memref<2x8x32xf32, #tpu.memory_space<vmem>>, %arg5: memref<8x64xf32, #tpu.memory_space<vmem>>) attributes {dimension_semantics = [#tpu.dimension_semantics<parallel>], iteration_bounds = array<i64: 1>, scalar_prefetch = 0 : i64, scratch_operands = 1 : i64, tpu.core_type = #tpu.core_type<tc>, window_params = [{transform_indices = @transform_0, window_bounds = array<i64: 2, 8, 32>}, {pipeline_mode = #tpu.pipeline_mode<synchronous>, transform_indices = @transform_1, window_bounds = array<i64: 64, 32>}, {pipeline_mode = #tpu.pipeline_mode<synchronous>, transform_indices = @transform_2, window_bounds = array<i64: 1, 32>}, {transform_indices = @transform_3, window_bounds = array<i64: 2, 8, 32>}]} {
    %c0 = arith.constant 0 : index
    %c0_0 = arith.constant 0 : index
    %0 = vector.load %arg2[%c0, %c0_0] : memref<64x32xf32, #tpu.memory_space<vmem>>, vector<64x32xf32>
    %c0_1 = arith.constant 0 : index
    %c0_2 = arith.constant 0 : index
    %1 = vector.load %arg3[%c0_1, %c0_2] : memref<1x32xf32, #tpu.memory_space<vmem>>, vector<1x32xf32>
    %2 = tpu.iota {dimensions = array<i32: 0>} : vector<8x32xi32>
    %c1_i32 = arith.constant 1 : i32
    %3 = vector.broadcast %c1_i32 : i32 to vector<8x32xi32>
    %4 = arith.minsi %2, %3 : vector<8x32xi32>
    %5 = arith.sitofp %4 : vector<8x32xi32> to vector<8x32xf32>
    %cst = arith.constant 1.000000e+00 : f32
    %6 = vector.broadcast %cst : f32 to vector<8x32xf32>
    %7 = arith.addf %5, %6 : vector<8x32xf32>
    %cst_3 = arith.constant 1.000000e+00 : f32
    %8 = vector.broadcast %cst_3 : f32 to vector<8x32xf32>
    %9 = arith.divf %8, %7 : vector<8x32xf32>
    %c0_4 = arith.constant 0 : index
    %c0_5 = arith.constant 0 : index
    %c0_6 = arith.constant 0 : index
    %10 = vector.load %arg1[%c0_4, %c0_5, %c0_6] : memref<2x8x32xf32, #tpu.memory_space<vmem>>, vector<1x8x32xf32>
    %11 = vector.shape_cast %10 : vector<1x8x32xf32> to vector<8x32xf32>
    %c0_7 = arith.constant 0 : index
    %c32 = arith.constant 32 : index
    %12 = vector.load %arg5[%c0_7, %c32] : memref<8x64xf32, #tpu.memory_space<vmem>>, vector<8x32xf32>
    tpu.vector_store %arg5[%c0_7, %c32], %11 {strides = array<i32>} : memref<8x64xf32, #tpu.memory_space<vmem>>, vector<8x32xf32>,
    %c1 = arith.constant 1 : index
    %c32_8 = arith.constant 32 : index
    %13 = vector.load %arg5[%c1, %c32_8] : memref<8x64xf32, #tpu.memory_space<vmem>>, vector<7x32xf32>
    %14 = vector.extract_strided_slice %11 {offsets = [0, 0], sizes = [7, 32], strides = [1, 1]} : vector<8x32xf32> to vector<7x32xf32>
    %15 = arith.addf %13, %14 : vector<7x32xf32>
    %c1_9 = arith.constant 1 : index
    %c32_10 = arith.constant 32 : index
    %16 = vector.load %arg5[%c1_9, %c32_10] : memref<8x64xf32, #tpu.memory_space<vmem>>, vector<7x32xf32>
    tpu.vector_store %arg5[%c1_9, %c32_10], %15 {strides = array<i32>} : memref<8x64xf32, #tpu.memory_space<vmem>>, vector<7x32xf32>,
    %c0_11 = arith.constant 0 : index
    %c32_12 = arith.constant 32 : index
    %17 = vector.load %arg5[%c0_11, %c32_12] : memref<8x64xf32, #tpu.memory_space<vmem>>, vector<8x32xf32>
    %18 = arith.mulf %17, %9 : vector<8x32xf32>
    %c0_13 = arith.constant 0 : index
    %c32_14 = arith.constant 32 : index
    %19 = vector.load %arg5[%c0_13, %c32_14] : memref<8x64xf32, #tpu.memory_space<vmem>>, vector<8x32xf32>
    tpu.vector_store %arg5[%c0_13, %c32_14], %18 {strides = array<i32>} : memref<8x64xf32, #tpu.memory_space<vmem>>, vector<8x32xf32>,
    %c0_15 = arith.constant 0 : index
    %c0_16 = arith.constant 0 : index
    %20 = vector.load %arg5[%c0_15, %c0_16] : memref<8x64xf32, #tpu.memory_space<vmem>>, vector<8x32xf32>
    tpu.vector_store %arg5[%c0_15, %c0_16], %11 {strides = array<i32>} : memref<8x64xf32, #tpu.memory_space<vmem>>, vector<8x32xf32>,
    %c0_17 = arith.constant 0 : index
    %c0_18 = arith.constant 0 : index
    %21 = vector.load %arg5[%c0_17, %c0_18] : memref<8x64xf32, #tpu.memory_space<vmem>>, vector<8x64xf32>
    %cst_19 = arith.constant dense<0.000000e+00> : vector<8x32xf32>
    %22 = tpu.matmul %21, %0, %cst_19 {dimension_numbers = #tpu.dot_dimension_numbers<[1], [0], [0], [1], [0, 0, 1, 1], [], []>} : vector<8x64xf32>, vector<64x32xf32>, vector<8x32xf32> -> vector<8x32xf32>
    %23 = vector.broadcast %1 : vector<1x32xf32> to vector<8x32xf32>
    %24 = arith.addf %22, %23 : vector<8x32xf32>
    %c0_20 = arith.constant 0 : index
    %c0_21 = arith.constant 0 : index
    %c0_22 = arith.constant 0 : index
    %25 = vector.load %arg4[%c0_20, %c0_21, %c0_22] : memref<2x8x32xf32, #tpu.memory_space<vmem>>, vector<1x8x32xf32>
    %26 = vector.shape_cast %25 : vector<1x8x32xf32> to vector<8x32xf32>
    %27 = vector.shape_cast %24 : vector<8x32xf32> to vector<1x8x32xf32>
    tpu.vector_store %arg4[%c0_20, %c0_21, %c0_22], %27 {strides = array<i32>} : memref<2x8x32xf32, #tpu.memory_space<vmem>>, vector<1x8x32xf32>,
    %c1_23 = arith.constant 1 : index
    %c0_24 = arith.constant 0 : index
    %c0_25 = arith.constant 0 : index
    %28 = vector.load %arg1[%c1_23, %c0_24, %c0_25] : memref<2x8x32xf32, #tpu.memory_space<vmem>>, vector<1x8x32xf32>
    %29 = vector.shape_cast %28 : vector<1x8x32xf32> to vector<8x32xf32>
    %c0_26 = arith.constant 0 : index
    %c32_27 = arith.constant 32 : index
    %30 = vector.load %arg5[%c0_26, %c32_27] : memref<8x64xf32, #tpu.memory_space<vmem>>, vector<8x32xf32>
    tpu.vector_store %arg5[%c0_26, %c32_27], %29 {strides = array<i32>} : memref<8x64xf32, #tpu.memory_space<vmem>>, vector<8x32xf32>,
    %c1_28 = arith.constant 1 : index
    %c32_29 = arith.constant 32 : index
    %31 = vector.load %arg5[%c1_28, %c32_29] : memref<8x64xf32, #tpu.memory_space<vmem>>, vector<7x32xf32>
    %32 = vector.extract_strided_slice %29 {offsets = [0, 0], sizes = [7, 32], strides = [1, 1]} : vector<8x32xf32> to vector<7x32xf32>
    %33 = arith.addf %31, %32 : vector<7x32xf32>
    %c1_30 = arith.constant 1 : index
    %c32_31 = arith.constant 32 : index
    %34 = vector.load %arg5[%c1_30, %c32_31] : memref<8x64xf32, #tpu.memory_space<vmem>>, vector<7x32xf32>
    tpu.vector_store %arg5[%c1_30, %c32_31], %33 {strides = array<i32>} : memref<8x64xf32, #tpu.memory_space<vmem>>, vector<7x32xf32>,
    %c0_32 = arith.constant 0 : index
    %c32_33 = arith.constant 32 : index
    %35 = vector.load %arg5[%c0_32, %c32_33] : memref<8x64xf32, #tpu.memory_space<vmem>>, vector<8x32xf32>
    %36 = arith.mulf %35, %9 : vector<8x32xf32>
    %c0_34 = arith.constant 0 : index
    %c32_35 = arith.constant 32 : index
    %37 = vector.load %arg5[%c0_34, %c32_35] : memref<8x64xf32, #tpu.memory_space<vmem>>, vector<8x32xf32>
    tpu.vector_store %arg5[%c0_34, %c32_35], %36 {strides = array<i32>} : memref<8x64xf32, #tpu.memory_space<vmem>>, vector<8x32xf32>,
    %c0_36 = arith.constant 0 : index
    %c0_37 = arith.constant 0 : index
    %38 = vector.load %arg5[%c0_36, %c0_37] : memref<8x64xf32, #tpu.memory_space<vmem>>, vector<8x32xf32>
    tpu.vector_store %arg5[%c0_36, %c0_37], %29 {strides = array<i32>} : memref<8x64xf32, #tpu.memory_space<vmem>>, vector<8x32xf32>,
    %c0_38 = arith.constant 0 : index
    %c0_39 = arith.constant 0 : index
    %39 = vector.load %arg5[%c0_38, %c0_39] : memref<8x64xf32, #tpu.memory_space<vmem>>, vector<8x64xf32>
    %cst_40 = arith.constant dense<0.000000e+00> : vector<8x32xf32>
    %40 = tpu.matmul %39, %0, %cst_40 {dimension_numbers = #tpu.dot_dimension_numbers<[1], [0], [0], [1], [0, 0, 1, 1], [], []>} : vector<8x64xf32>, vector<64x32xf32>, vector<8x32xf32> -> vector<8x32xf32>
    %41 = vector.broadcast %1 : vector<1x32xf32> to vector<8x32xf32>
    %42 = arith.addf %40, %41 : vector<8x32xf32>
    %c1_41 = arith.constant 1 : index
    %c0_42 = arith.constant 0 : index
    %c0_43 = arith.constant 0 : index
    %43 = vector.load %arg4[%c1_41, %c0_42, %c0_43] : memref<2x8x32xf32, #tpu.memory_space<vmem>>, vector<1x8x32xf32>
    %44 = vector.shape_cast %43 : vector<1x8x32xf32> to vector<8x32xf32>
    %45 = vector.shape_cast %42 : vector<8x32xf32> to vector<1x8x32xf32>
    tpu.vector_store %arg4[%c1_41, %c0_42, %c0_43], %45 {strides = array<i32>} : memref<2x8x32xf32, #tpu.memory_space<vmem>>, vector<1x8x32xf32>,
    return
  }
  func.func @transform_0(%arg0: i32) -> (i32, i32, i32) {
    %c0_i32 = arith.constant 0 : i32
    %c0_i32_0 = arith.constant 0 : i32
    %c0_i32_1 = arith.constant 0 : i32
    return %arg0, %c0_i32, %c0_i32_0 : i32, i32, i32
  }
  func.func @transform_1(%arg0: i32) -> (i32, i32) {
    %c0_i32 = arith.constant 0 : i32
    %c0_i32_0 = arith.constant 0 : i32
    %c0_i32_1 = arith.constant 0 : i32
    return %c0_i32, %c0_i32_0 : i32, i32
  }
  func.func @transform_2(%arg0: i32) -> (i32, i32) {
    %c0_i32 = arith.constant 0 : i32
    %c0_i32_0 = arith.constant 0 : i32
    %c0_i32_1 = arith.constant 0 : i32
    return %c0_i32, %c0_i32_0 : i32, i32
  }
  func.func @transform_3(%arg0: i32) -> (i32, i32, i32) {
    %c0_i32 = arith.constant 0 : i32
    %c0_i32_0 = arith.constant 0 : i32
    %c0_i32_1 = arith.constant 0 : i32
    return %arg0, %c0_i32, %c0_i32_0 : i32, i32, i32
  }
}

</mosaic_0001>

<llo_original>
// kernel: tpu_custom_call.1
$region0: #{tpu_custom_call.1}
  #allocation0 [shape = 'u32[]', space=smem, size = 0x4, offset = 0x4, fixed_abs, tag = 'smem constant byte address 0x4 - core index']
  #allocation1 [shape = 'u32[72,128]{1,0:T(1,128)}', space=vmem, size = 0x9000, scoped, tag = 'internal scratch']
  #allocation2 [shape = 'f32[8,64]{1,0:T(8,128)}', space=vmem, size = 0x1000, scoped, tag = 'scratch operand']
  %s0 = inlined_call_operand.vmem [shape: f32[2,8,32], index: 0, kind: input, shape index: {}]
  %s1 = inlined_call_operand.vmem [shape: f32[64,32], index: 1, kind: input, shape index: {}]
  %s2 = inlined_call_operand.vmem [shape: f32[1,32], index: 2, kind: input, shape index: {}]
  %s3 = inlined_call_operand.hbm [shape: f32[2,8,32], index: 3, kind: output, shape index: {}]
  %s4 = sld [smem:[#allocation0]]
  $region22: #{tpu_custom_call.1} parent=0
    _
  %s6 = ssub.s32 1, %s4
  %s7 = scalar_select 0, %s6, %s4
  $region1: #{tpu_custom_call.1} parent=0
    #allocation3 [shape = 'u8[8192]{0}', space=vmem, size = 0x2000, scoped, tag = 'output window, operand 0, single buffered']
    #allocation4 [shape = 's32[1]{0}', space=sflag, size = 0x4, scoped, tag = 'scoped memory for tpu_custom_call.1']
    %8 = vsyncpa [#allocation4], 0
    // Predicated region
    $region2: #{tpu_custom_call.1} parent=1 // pred_check
      _
    $region3: #{tpu_custom_call.1} parent=1 // pred_check_branch
      %10 = sbr.rel (0) target = $region5
    $region4: #{tpu_custom_call.1} parent=1 // pred_region
      _
    $region5: #{tpu_custom_call.1} parent=1 // pred_fallthru
      _
    // Predicated region
    $region6: #{tpu_custom_call.1} parent=1 // pred_check
      _
    $region7: #{tpu_custom_call.1} parent=1 // pred_check_branch
      %12 = sbr.rel (0) target = $region9
    $region8: #{tpu_custom_call.1} parent=1 // pred_region
      _
    $region9: #{tpu_custom_call.1} parent=1 // pred_fallthru
      _
    // Predicated region
    $region10: #{tpu_custom_call.1} parent=1 // pred_check
      _
    $region11: #{tpu_custom_call.1} parent=1 // pred_check_branch
      %14 = sbr.rel (0) target = $region13
    $region12: #{tpu_custom_call.1} parent=1 // pred_region
      _
    $region13: #{tpu_custom_call.1} parent=1 // pred_fallthru
      _
    %v15 = vld [vmem:[%s1] sm:$0xff]
    %v16 = vld [vmem:[%s1 + $0x8] sm:$0xff]
    %v17 = vld [vmem:[%s1 + $0x10] sm:$0xff]
    %v18 = vld [vmem:[%s1 + $0x18] sm:$0xff]
    %v19 = vld [vmem:[%s1 + $0x20] sm:$0xff]
    %v20 = vld [vmem:[%s1 + $0x28] sm:$0xff]
    %v21 = vld [vmem:[%s1 + $0x30] sm:$0xff]
    %v22 = vld [vmem:[%s1 + $0x38] sm:$0xff]
    %v23 = vld [vmem:[%s2] sm:$0x1]
    %v24 = vlaneseq
    %v25 = vshrl.u32 %v24, 7
    %vm26 = vcmp.lt.s32.totalorder %v25, 1
    %v27 = vsel %vm26, %v25, 1
    %v28 = vcvt.s32.f32 %v27
    %v29 = vadd.f32 %v28, 1.0
    %v30 = vrcp.pop %v29
    %v31 = vmul.f32 %v29, %v30
    %v32 = vsub.f32 1.0, %v31
    %v33 = vmul.f32 %v30, %v32
    %v34 = vadd.f32 %v30, %v33
    %vm35 = vweird.f32 %v29
    %vm36 = vweird.f32 %v30
    %vm37 = vmor %vm35, %vm36
    %v38 = vsel %vm37, %v30, %v34
    %v39 = vand.u32 2147483647, %v29
    %vm40 = vcmp.eq.f32.partialorder %v39, 8.507059e+37
    %v41 = vand.u32 %v29, 2147483648
    %v42 = vor.u32 1.1754944e-38, %v41
    %v43 = vsel %vm40, %v42, %v38
    %v44 = vmul.f32 1.0, %v43
    %v45 = vld [vmem:[%s0] sm:$0xff]
    %47 = vrot.lane.b32.xlu0 %v45, 32
    %v48 = vpop.permute.xlu0 %47
    %vm50 = vcmask 523520
    %51 = vst.msk [vmem:[#allocation2] sm:$0xff] %vm50, %v48
    %v52 = vld [vmem:[#allocation2 + $0x1] sm:$0x7f]
    %v53 = vadd.f32 %v52, %v48
    %vm54 = vcmask 522496
    %55 = vst.msk [vmem:[#allocation2 + $0x1] sm:$0x7f] %vm54, %v53
    %v56 = vld [vmem:[#allocation2] sm:$0xff]
    %v57 = vmul.f32 %v56, %v44
    %58 = vst.msk [vmem:[#allocation2] sm:$0xff] %vm50, %v57
    %vm59 = vcmask 261120
    %60 = vst.msk [vmem:[#allocation2] sm:$0xff] %vm59, %v45
    %v61 = vld [vmem:[#allocation2] sm:$0xff]
    %v63 = vperm.slane %v23, 0
    %vm65 = vcmask 523264
    %v67 = vsel %vm65, %v61, 0
    %69 = vmatpush.msra.mxu0 0.0
    %70 = vmatpush.msra.mxu0 0.0
    %71 = vmatpush.msra.mxu0 0.0
    %72 = vmatpush.msra.mxu0 0.0
    %73 = vmatpush.msra.mxu0 0.0
    %74 = vmatpush.msra.mxu0 0.0
    %75 = vmatpush.msra.mxu0 0.0
    %76 = vmatpush.msra.mxu0 0.0
    %77 = vmatpush.msra.mxu0 %v22
    %78 = vmatpush.msra.mxu0 %v21
    %79 = vmatpush.msra.mxu0 %v20
    %80 = vmatpush.msra.mxu0 %v19
    %81 = vmatpush.msra.mxu0 %v18
    %82 = vmatpush.msra.mxu0 %v17
    %83 = vmatpush.msra.mxu0 %v16
    %84 = vmatpush.msra.mxu0 %v15
    %85 = vmatmul.f32.gmra.mxu0 %v67
    %v86 = vpop.f32.mrf.mxu0
    %v87 = vadd.f32 %v63, %v86
    %88 = vdwg.mxu0
    %89 = vst.msk [vmem:[#allocation3] sm:$0xff] %vm59, %v87
    %s90 = scalar_lea.vmem %s0, 8
    %v91 = vld [vmem:[%s90] sm:$0xff]
    %93 = vrot.lane.b32.xlu0 %v91, 32
    %v94 = vpop.permute.xlu0 %93
    %96 = vst.msk [vmem:[#allocation2] sm:$0xff] %vm50, %v94
    %v97 = vld [vmem:[#allocation2 + $0x1] sm:$0x7f]
    %v98 = vadd.f32 %v97, %v94
    %99 = vst.msk [vmem:[#allocation2 + $0x1] sm:$0x7f] %vm54, %v98
    %v100 = vld [vmem:[#allocation2] sm:$0xff]
    %v101 = vmul.f32 %v100, %v44
    %102 = vst.msk [vmem:[#allocation2] sm:$0xff] %vm50, %v101
    %103 = vst.msk [vmem:[#allocation2] sm:$0xff] %vm59, %v91
    %v104 = vld [vmem:[#allocation2] sm:$0xff]
    %v106 = vsel %vm65, %v104, 0
    %108 = vmatpush.msra.mxu0 0.0
    %109 = vmatpush.msra.mxu0 0.0
    %110 = vmatpush.msra.mxu0 0.0
    %111 = vmatpush.msra.mxu0 0.0
    %112 = vmatpush.msra.mxu0 0.0
    %113 = vmatpush.msra.mxu0 0.0
    %114 = vmatpush.msra.mxu0 0.0
    %115 = vmatpush.msra.mxu0 0.0
    %116 = vmatpush.msra.mxu0 %v22
    %117 = vmatpush.msra.mxu0 %v21
    %118 = vmatpush.msra.mxu0 %v20
    %119 = vmatpush.msra.mxu0 %v19
    %120 = vmatpush.msra.mxu0 %v18
    %121 = vmatpush.msra.mxu0 %v17
    %122 = vmatpush.msra.mxu0 %v16
    %123 = vmatpush.msra.mxu0 %v15
    %124 = vmatmul.f32.gmra.mxu0 %v106
    %v125 = vpop.f32.mrf.mxu0
    %v126 = vadd.f32 %v63, %v125
    %127 = vdwg.mxu0
    %s128 = scalar_lea.vmem [#allocation3], 8
    %129 = vst.msk [vmem:[%s128] sm:$0xff] %vm59, %v126
    // Predicated region
    $region14: #{tpu_custom_call.1} parent=1 // pred_check
      _
    $region15: #{tpu_custom_call.1} parent=1 // pred_check_branch
      %131 = sbr.rel (0) target = $region17
    $region16: #{tpu_custom_call.1} parent=1 // pred_region
      %133 = vsyncadd [#allocation4], 0
      %s134 = sshll.u32 [#allocation3], 4
      %s135 = int_to_ptr.vmem [resolvable:$true] %s134
      %s136 = sshll.u32 %s3, 4
      %s137 = int_to_ptr.hbm [resolvable:$true] %s136
      %142 = dma.vmem_to_hbm [thread:$0]  %s135, 256, %s137, [#allocation4], 128, 128, 8
    $region17: #{tpu_custom_call.1} parent=1 // pred_fallthru
      _
    // Predicated region
    $region18: #{tpu_custom_call.1} parent=1 // pred_check
      _
    $region19: #{tpu_custom_call.1} parent=1 // pred_check_branch
      %144 = sbr.rel (0) target = $region21
    $region20: #{tpu_custom_call.1} parent=1 // pred_region
      %146 = dma.done [#allocation4], 256
    $region21: #{tpu_custom_call.1} parent=1 // pred_fallthru
      _
    %147 = vsyncpa [#allocation4], 1

</llo_original>
